<compile_context>
chip_gen: v7x
topology: tpu7x:2x2x1
jax: 0.10.0
libtpu: 0.0.40
codegen_flags: <defaults>
</compile_context>

<pallas_src>
import jax
import jax.numpy as jnp
from jax.experimental import pallas as pl
from jax.experimental.pallas import tpu as pltpu

D1 = 256   # fc1:    200 -> 256 (lane-padded)
D2 = 128   # fc2:    100 -> 128
D3 = 128   # action:   2 -> 128 (only first 2 columns are real)

TB_CAP = 512                      # max batch-tile rows (keeps grid >= 4 on v7x)
TK_CAP = 2048                     # max fc1 reduction chunk
VMEM_BUDGET = 12 * 1024 * 1024    # conservative: fits v5e's 16 MiB scoped default


def _round_up(x, m):
    return (x + m - 1) // m * m


def _pick_tk(s_dim):
    """fc1 reduction chunk; must divide s_dim exactly (no garbage accumulation)."""
    if s_dim <= TK_CAP or s_dim % 128 != 0:
        return s_dim
    for tk in range(TK_CAP, 0, -128):
        if s_dim % tk == 0:
            return tk
    return s_dim


def _vmem_need(tb, tk):
    # Double-buffered pipeline tiles + scratch (weights counted x2: the default
    # pipeline allocates two buffers even for constant index_maps).
    return (2 * tb * tk * 4                  # x tile (f32)
            + 2 * tk * D1 * 2                # w1 tile (bf16)
            + 2 * (D1 * D2 + D2 * D3) * 2    # w2, w3 (bf16)
            + 2 * (D1 + D2 + D3) * 4         # biases (f32)
            + tb * D1 * 4                    # fc1 f32 accumulator scratch
            + 2 * tb * 2 * 4                 # output tile (f32)
            + tb * D1 * 4)                   # headroom for fc2/fc3 temporaries


def _pick_tb(batch, tk):
    """Batch tile: multiple of 16 rows, >=4 tiles when possible, VMEM-budgeted."""
    tb = min(TB_CAP, _round_up(pl.cdiv(batch, 4), 16))
    while tb > 16 and _vmem_need(tb, tk) > VMEM_BUDGET:
        tb -= 16
    return max(tb, 16)


def actor_kernel(x_ref, w1_ref, b1_ref, w2_ref, b2_ref, w3_ref, b3_ref,
                 o_ref, acc_ref):
    # Grid: (batch tiles, fc1 reduction chunks).
    # x:  (tb, tk) f32    w1: (tk, D1) bf16    b1: (1, D1) f32
    # w2: (D1, D2) bf16   b2: (1, D2) f32
    # w3: (D2, D3) bf16   b3: (1, D3) f32
    # o:  (tb, 2)  f32    acc: (tb, D1) f32 scratch
    k = pl.program_id(1)

    @pl.when(k == 0)
    def _():
        acc_ref[...] = jnp.zeros_like(acc_ref)

    # f32 -> bf16 cast happens in-kernel (free VPU slot); HBM carries x once
    # in its native dtype instead of an extra wrapper-side cast pass.
    x = x_ref[...].astype(jnp.bfloat16)
    acc_ref[...] += jnp.dot(x, w1_ref[...], preferred_element_type=jnp.float32)

    @pl.when(k == pl.num_programs(1) - 1)
    def _():
        h1 = jnp.maximum(acc_ref[...] + b1_ref[...], 0.0)            # relu(fc1)
        h2 = jnp.dot(h1.astype(jnp.bfloat16), w2_ref[...],
                     preferred_element_type=jnp.float32) + b2_ref[...]
        h2 = jnp.maximum(h2, 0.0)                                     # relu(fc2)
        a = jnp.dot(h2.astype(jnp.bfloat16), w3_ref[...],
                    preferred_element_type=jnp.float32) + b3_ref[...]

        # action = cat([sigmoid(a[:, 0]), tanh(a[:, 1])], dim=1)
        # Single transcendental per element: sigmoid(x) = 0.5*(1 + tanh(0.5*x)).
        col = jax.lax.broadcasted_iota(jnp.int32, a.shape, 1)
        is_sig = col == 0
        t = jnp.tanh(jnp.where(is_sig, 0.5 * a, a))
        out = jnp.where(is_sig, 0.5 + 0.5 * t, t)
        # Only the 2 real action columns leave the kernel (8 B/row, not 512).
        o_ref[...] = out[:, :2].astype(o_ref.dtype)


@jax.jit
def actor_forward(x_nchw, w1, b1, w2, b2, w3, b3):
    """x_nchw: (B, C, H, W) float32.  Returns (B, 2) float32 actions."""
    batch = x_nchw.shape[0]
    # "conv" feature stage modeled as NCHW flatten -> (B, s_dim).
    # TODO(synk): the concrete conv sub-model (`self.conv`) is injected and not
    # defined in the module; only its flattened output width s_dim is used.
    x = x_nchw.reshape(batch, -1)            # stays f32; bf16 cast is in-kernel
    s_dim = x.shape[1]

    tk = _pick_tk(s_dim)
    tb = _pick_tb(batch, tk)
    nb = pl.cdiv(batch, tb)                  # ragged tail: read-pad/write-mask,
    nk = s_dim // tk                         # no jnp.pad copy of x

    flops = 2 * batch * (s_dim * D1 + D1 * D2 + D2 * D3)
    bytes_accessed = (batch * s_dim * 4                        # x (f32, read once)
                      + (s_dim * D1 + D1 * D2 + D2 * D3) * 2   # weights (bf16)
                      + (D1 + D2 + D3) * 4                     # biases (f32)
                      + batch * 2 * 4)                         # output (2 cols, f32)

    return pl.pallas_call(
        actor_kernel,
        out_shape=jax.ShapeDtypeStruct((batch, 2), jnp.float32),
        grid_spec=pltpu.PrefetchScalarGridSpec(
            num_scalar_prefetch=0,
            grid=(nb, nk),
            in_specs=[
                pl.BlockSpec((tb, tk), lambda i, k: (i, k)),    # x (B x K tiles)
                pl.BlockSpec((tk, D1), lambda i, k: (k, 0)),    # w1 (streamed over K)
                pl.BlockSpec((1, D1), lambda i, k: (0, 0)),     # b1 (resident)
                pl.BlockSpec((D1, D2), lambda i, k: (0, 0)),    # w2 (resident)
                pl.BlockSpec((1, D2), lambda i, k: (0, 0)),     # b2
                pl.BlockSpec((D2, D3), lambda i, k: (0, 0)),    # w3 (resident)
                pl.BlockSpec((1, D3), lambda i, k: (0, 0)),     # b3
            ],
            out_specs=pl.BlockSpec((tb, 2), lambda i, k: (i, 0)),
            scratch_shapes=[pltpu.VMEM((tb, D1), jnp.float32)],  # fc1 accumulator
        ),
        compiler_params=pltpu.CompilerParams(
            dimension_semantics=("parallel", "arbitrary"),
            vmem_limit_bytes=32 * 1024 * 1024),
        cost_estimate=pl.CostEstimate(
            flops=flops,
            transcendentals=batch * D3,
            bytes_accessed=bytes_accessed),
    )(x, w1, b1, w2, b2, w3, b3)


def kaiming_normal(key, out_dim, in_dim):
    # nn.init.kaiming_normal_ (fan_in, relu gain): std = sqrt(2 / fan_in).
    std = jnp.sqrt(2.0 / in_dim)
    # torch Linear weight is (out, in); return transposed as (in, out).
    w = jax.random.normal(key, (out_dim, in_dim), dtype=jnp.float32) * std
    return w.T


def make_params(key, s_dim):
    """Lane-padded bf16 weights (zero-filled padding) + f32 biases."""
    k1, k2, k3 = jax.random.split(key, 3)

    w1 = kaiming_normal(k1, 200, s_dim)                     # (s_dim, 200)
    w2 = kaiming_normal(k2, 100, 200)                       # (200, 100)
    w3 = kaiming_normal(k3, 2, 100)                         # (100, 2)

    w1p = jnp.zeros((s_dim, D1), jnp.float32).at[:, :200].set(w1)
    w2p = jnp.zeros((D1, D2), jnp.float32).at[:200, :100].set(w2)
    w3p = jnp.zeros((D2, D3), jnp.float32).at[:100, :2].set(w3)

    # Biases initialize to 0 (nn.init.constant_(m.bias, 0)).
    b1 = jnp.zeros((1, D1), jnp.float32)
    b2 = jnp.zeros((1, D2), jnp.float32)
    b3 = jnp.zeros((1, D3), jnp.float32)

    return (w1p.astype(jnp.bfloat16), b1,
            w2p.astype(jnp.bfloat16), b2,
            w3p.astype(jnp.bfloat16), b3)


def reference_forward(x_nchw, w1, b1, w2, b2, w3, b3):
    """Pure-JAX reference mirroring the kernel's bf16/f32 numerics."""
    batch = x_nchw.shape[0]
    x = x_nchw.reshape(batch, -1).astype(jnp.bfloat16)
    h1 = jnp.maximum(
        jnp.dot(x, w1, preferred_element_type=jnp.float32) + b1, 0.0)
    h2 = jnp.maximum(
        jnp.dot(h1.astype(jnp.bfloat16), w2,
                preferred_element_type=jnp.float32) + b2, 0.0)
    a = jnp.dot(h2.astype(jnp.bfloat16), w3,
                preferred_element_type=jnp.float32) + b3
    return jnp.concatenate(
        [jax.nn.sigmoid(a[:, 0:1]), jnp.tanh(a[:, 1:2])], axis=1)


if __name__ == "__main__":
    key = jax.random.PRNGKey(0)
    k_x, k_p = jax.random.split(key)

    B, C, H, W = 2, 4, 16, 16           # small NCHW input
    s_dim = C * H * W                   # 1024 features after the "conv" stage

    x = jax.random.normal(k_x, (B, C, H, W), dtype=jnp.float32)
    params = make_params(k_p, s_dim)

    out = jax.block_until_ready(actor_forward(x, *params))
    ref = reference_forward(x, *params)

    assert out.shape == (B, 2), out.shape
    assert jnp.allclose(out, ref, atol=2e-3, rtol=2e-3), (out, ref)

    print("KERNEL_OK")
</pallas_src>

<mosaic_0001>
module attributes {stable_mosaic.version = 11 : i64} {
  func.func @actor_kernel(%arg0: i32, %arg1: i32, %arg2: memref<16x1024xf32, #tpu.memory_space<vmem>>, %arg3: memref<1024x256xbf16, #tpu.memory_space<vmem>>, %arg4: memref<1x256xf32, #tpu.memory_space<vmem>>, %arg5: memref<256x128xbf16, #tpu.memory_space<vmem>>, %arg6: memref<1x128xf32, #tpu.memory_space<vmem>>, %arg7: memref<128x128xbf16, #tpu.memory_space<vmem>>, %arg8: memref<1x128xf32, #tpu.memory_space<vmem>>, %arg9: memref<16x2xf32, #tpu.memory_space<vmem>>, %arg10: memref<16x256xf32, #tpu.memory_space<vmem>>) attributes {dimension_semantics = [#tpu.dimension_semantics<parallel>, #tpu.dimension_semantics<arbitrary>], iteration_bounds = array<i64: 1, 1>, scalar_prefetch = 0 : i64, scratch_operands = 1 : i64, tpu.core_type = #tpu.core_type<tc>, window_params = [{transform_indices = @transform_0, window_bounds = array<i64: 16, 1024>}, {transform_indices = @transform_1, window_bounds = array<i64: 1024, 256>}, {pipeline_mode = #tpu.pipeline_mode<synchronous>, transform_indices = @transform_2, window_bounds = array<i64: 1, 256>}, {pipeline_mode = #tpu.pipeline_mode<synchronous>, transform_indices = @transform_3, window_bounds = array<i64: 256, 128>}, {pipeline_mode = #tpu.pipeline_mode<synchronous>, transform_indices = @transform_4, window_bounds = array<i64: 1, 128>}, {pipeline_mode = #tpu.pipeline_mode<synchronous>, transform_indices = @transform_5, window_bounds = array<i64: 128, 128>}, {pipeline_mode = #tpu.pipeline_mode<synchronous>, transform_indices = @transform_6, window_bounds = array<i64: 1, 128>}, {transform_indices = @transform_7, window_bounds = array<i64: 16, 2>}]} {
    %c0_i32 = arith.constant 0 : i32
    %0 = arith.cmpi eq, %arg1, %c0_i32 : i32
    %1 = arith.extui %0 : i1 to i32
    %c0_i32_0 = arith.constant 0 : i32
    %2 = arith.cmpi ne, %1, %c0_i32_0 : i32
    scf.if %2 {
      %cst_10 = arith.constant 0.000000e+00 : f32
      %13 = vector.broadcast %cst_10 : f32 to vector<16x256xf32>
      %c0_11 = arith.constant 0 : index
      %c0_12 = arith.constant 0 : index
      %14 = vector.load %arg10[%c0_11, %c0_12] : memref<16x256xf32, #tpu.memory_space<vmem>>, vector<16x256xf32>
      tpu.vector_store %arg10[%c0_11, %c0_12], %13 {strides = array<i32>} : memref<16x256xf32, #tpu.memory_space<vmem>>, vector<16x256xf32>,
    } else {
    }
    %c0 = arith.constant 0 : index
    %c0_1 = arith.constant 0 : index
    %3 = vector.load %arg2[%c0, %c0_1] : memref<16x1024xf32, #tpu.memory_space<vmem>>, vector<16x1024xf32>
    %4 = arith.truncf %3 : vector<16x1024xf32> to vector<16x1024xbf16>
    %c0_2 = arith.constant 0 : index
    %c0_3 = arith.constant 0 : index
    %5 = vector.load %arg10[%c0_2, %c0_3] : memref<16x256xf32, #tpu.memory_space<vmem>>, vector<16x256xf32>
    %c0_4 = arith.constant 0 : index
    %c0_5 = arith.constant 0 : index
    %6 = vector.load %arg3[%c0_4, %c0_5] : memref<1024x256xbf16, #tpu.memory_space<vmem>>, vector<1024x256xbf16>
    %cst = arith.constant dense<0.000000e+00> : vector<16x256xf32>
    %7 = tpu.matmul %4, %6, %cst {dimension_numbers = #tpu.dot_dimension_numbers<[1], [0], [0], [1], [0, 0, 1, 1], [], []>} : vector<16x1024xbf16>, vector<1024x256xbf16>, vector<16x256xf32> -> vector<16x256xf32>
    %8 = arith.addf %5, %7 : vector<16x256xf32>
    %c0_6 = arith.constant 0 : index
    %c0_7 = arith.constant 0 : index
    %9 = vector.load %arg10[%c0_6, %c0_7] : memref<16x256xf32, #tpu.memory_space<vmem>>, vector<16x256xf32>
    tpu.vector_store %arg10[%c0_6, %c0_7], %8 {strides = array<i32>} : memref<16x256xf32, #tpu.memory_space<vmem>>, vector<16x256xf32>,
    %c0_i32_8 = arith.constant 0 : i32
    %10 = arith.cmpi eq, %arg1, %c0_i32_8 : i32
    %11 = arith.extui %10 : i1 to i32
    %c0_i32_9 = arith.constant 0 : i32
    %12 = arith.cmpi ne, %11, %c0_i32_9 : i32
    scf.if %12 {
      %c0_10 = arith.constant 0 : index
      %c0_11 = arith.constant 0 : index
      %13 = vector.load %arg10[%c0_10, %c0_11] : memref<16x256xf32, #tpu.memory_space<vmem>>, vector<16x256xf32>
      %c0_12 = arith.constant 0 : index
      %c0_13 = arith.constant 0 : index
      %14 = vector.load %arg4[%c0_12, %c0_13] : memref<1x256xf32, #tpu.memory_space<vmem>>, vector<1x256xf32>
      %15 = vector.broadcast %14 : vector<1x256xf32> to vector<16x256xf32>
      %16 = arith.addf %13, %15 : vector<16x256xf32>
      %cst_14 = arith.constant 0.000000e+00 : f32
      %17 = vector.broadcast %cst_14 : f32 to vector<16x256xf32>
      %18 = arith.maximumf %16, %17 : vector<16x256xf32>
      %19 = arith.truncf %18 : vector<16x256xf32> to vector<16x256xbf16>
      %c0_15 = arith.constant 0 : index
      %c0_16 = arith.constant 0 : index
      %20 = vector.load %arg5[%c0_15, %c0_16] : memref<256x128xbf16, #tpu.memory_space<vmem>>, vector<256x128xbf16>
      %cst_17 = arith.constant dense<0.000000e+00> : vector<16x128xf32>
      %21 = tpu.matmul %19, %20, %cst_17 {dimension_numbers = #tpu.dot_dimension_numbers<[1], [0], [0], [1], [0, 0, 1, 1], [], []>} : vector<16x256xbf16>, vector<256x128xbf16>, vector<16x128xf32> -> vector<16x128xf32>
      %c0_18 = arith.constant 0 : index
      %c0_19 = arith.constant 0 : index
      %22 = vector.load %arg6[%c0_18, %c0_19] : memref<1x128xf32, #tpu.memory_space<vmem>>, vector<1x128xf32>
      %23 = vector.broadcast %22 : vector<1x128xf32> to vector<16x128xf32>
      %24 = arith.addf %21, %23 : vector<16x128xf32>
      %cst_20 = arith.constant 0.000000e+00 : f32
      %25 = vector.broadcast %cst_20 : f32 to vector<16x128xf32>
      %26 = arith.maximumf %24, %25 : vector<16x128xf32>
      %27 = arith.truncf %26 : vector<16x128xf32> to vector<16x128xbf16>
      %c0_21 = arith.constant 0 : index
      %c0_22 = arith.constant 0 : index
      %28 = vector.load %arg7[%c0_21, %c0_22] : memref<128x128xbf16, #tpu.memory_space<vmem>>, vector<128x128xbf16>
      %cst_23 = arith.constant dense<0.000000e+00> : vector<16x128xf32>
      %29 = tpu.matmul %27, %28, %cst_23 {dimension_numbers = #tpu.dot_dimension_numbers<[1], [0], [0], [1], [0, 0, 1, 1], [], []>} : vector<16x128xbf16>, vector<128x128xbf16>, vector<16x128xf32> -> vector<16x128xf32>
      %c0_24 = arith.constant 0 : index
      %c0_25 = arith.constant 0 : index
      %30 = vector.load %arg8[%c0_24, %c0_25] : memref<1x128xf32, #tpu.memory_space<vmem>>, vector<1x128xf32>
      %31 = vector.broadcast %30 : vector<1x128xf32> to vector<16x128xf32>
      %32 = arith.addf %29, %31 : vector<16x128xf32>
      %33 = tpu.iota {dimensions = array<i32: 1>} : vector<16x128xi32>
      %c0_i32_26 = arith.constant 0 : i32
      %34 = vector.broadcast %c0_i32_26 : i32 to vector<16x128xi32>
      %35 = arith.cmpi eq, %33, %34 : vector<16x128xi32>
      %cst_27 = arith.constant 5.000000e-01 : f32
      %36 = vector.broadcast %cst_27 : f32 to vector<16x128xf32>
      %37 = arith.mulf %36, %32 : vector<16x128xf32>
      %38 = arith.select %35, %37, %32 : vector<16x128xi1>, vector<16x128xf32>
      %39 = math.tanh %38 : vector<16x128xf32>
      %cst_28 = arith.constant 5.000000e-01 : f32
      %40 = vector.broadcast %cst_28 : f32 to vector<16x128xf32>
      %41 = arith.mulf %40, %39 : vector<16x128xf32>
      %cst_29 = arith.constant 5.000000e-01 : f32
      %42 = vector.broadcast %cst_29 : f32 to vector<16x128xf32>
      %43 = arith.addf %42, %41 : vector<16x128xf32>
      %44 = arith.select %35, %43, %39 : vector<16x128xi1>, vector<16x128xf32>
      %45 = vector.extract_strided_slice %44 {offsets = [0, 0], sizes = [16, 2], strides = [1, 1]} : vector<16x128xf32> to vector<16x2xf32>
      %c0_30 = arith.constant 0 : index
      %c0_31 = arith.constant 0 : index
      %46 = vector.load %arg9[%c0_30, %c0_31] : memref<16x2xf32, #tpu.memory_space<vmem>>, vector<16x2xf32>
      tpu.vector_store %arg9[%c0_30, %c0_31], %45 {strides = array<i32>} : memref<16x2xf32, #tpu.memory_space<vmem>>, vector<16x2xf32>,
    } else {
    }
    return
  }
  func.func @transform_0(%arg0: i32, %arg1: i32) -> (i32, i32) {
    %c0_i32 = arith.constant 0 : i32
    return %arg0, %arg1 : i32, i32
  }
  func.func @transform_1(%arg0: i32, %arg1: i32) -> (i32, i32) {
    %c0_i32 = arith.constant 0 : i32
    %c0_i32_0 = arith.constant 0 : i32
    return %arg1, %c0_i32 : i32, i32
  }
  func.func @transform_2(%arg0: i32, %arg1: i32) -> (i32, i32) {
    %c0_i32 = arith.constant 0 : i32
    %c0_i32_0 = arith.constant 0 : i32
    %c0_i32_1 = arith.constant 0 : i32
    return %c0_i32, %c0_i32_0 : i32, i32
  }
  func.func @transform_3(%arg0: i32, %arg1: i32) -> (i32, i32) {
    %c0_i32 = arith.constant 0 : i32
    %c0_i32_0 = arith.constant 0 : i32
    %c0_i32_1 = arith.constant 0 : i32
    return %c0_i32, %c0_i32_0 : i32, i32
  }
  func.func @transform_4(%arg0: i32, %arg1: i32) -> (i32, i32) {
    %c0_i32 = arith.constant 0 : i32
    %c0_i32_0 = arith.constant 0 : i32
    %c0_i32_1 = arith.constant 0 : i32
    return %c0_i32, %c0_i32_0 : i32, i32
  }
  func.func @transform_5(%arg0: i32, %arg1: i32) -> (i32, i32) {
    %c0_i32 = arith.constant 0 : i32
    %c0_i32_0 = arith.constant 0 : i32
    %c0_i32_1 = arith.constant 0 : i32
    return %c0_i32, %c0_i32_0 : i32, i32
  }
  func.func @transform_6(%arg0: i32, %arg1: i32) -> (i32, i32) {
    %c0_i32 = arith.constant 0 : i32
    %c0_i32_0 = arith.constant 0 : i32
    %c0_i32_1 = arith.constant 0 : i32
    return %c0_i32, %c0_i32_0 : i32, i32
  }
  func.func @transform_7(%arg0: i32, %arg1: i32) -> (i32, i32) {
    %c0_i32 = arith.constant 0 : i32
    %c0_i32_0 = arith.constant 0 : i32
    return %arg0, %c0_i32 : i32, i32
  }
}

</mosaic_0001>

<llo_original>
// kernel: actor_forward.1
$region0: #{actor_forward.1}
  #allocation0 [shape = 'u32[]', space=smem, size = 0x4, offset = 0x4, fixed_abs, tag = 'smem constant byte address 0x4 - core index']
  #allocation1 [shape = 'u32[144,128]{1,0:T(1,128)}', space=vmem, size = 0x12000, scoped, tag = 'internal scratch']
  #allocation2 [shape = 'f32[16,256]{1,0:T(8,128)}', space=vmem, size = 0x4000, scoped, tag = 'scratch operand']
  %s0 = inlined_call_operand.vmem [shape: f32[2,1024], index: 0, kind: input, shape index: {}]
  %s1 = inlined_call_operand.hbm [shape: bf16[1024,256], index: 1, kind: input, shape index: {}]
  %s2 = inlined_call_operand.vmem [shape: f32[1,256], index: 2, kind: input, shape index: {}]
  %s3 = inlined_call_operand.vmem [shape: bf16[256,128], index: 3, kind: input, shape index: {}]
  %s4 = inlined_call_operand.vmem [shape: f32[1,128], index: 4, kind: input, shape index: {}]
  %s5 = inlined_call_operand.hbm [shape: bf16[128,128], index: 5, kind: input, shape index: {}]
  %s6 = inlined_call_operand.vmem [shape: f32[1,128], index: 6, kind: input, shape index: {}]
  %s7 = inlined_call_operand.hbm [shape: f32[2,2], index: 7, kind: output, shape index: {}]
  %s8 = sld [smem:[#allocation0]]
  $region54: #{actor_forward.1} parent=0
    _
  %s10 = ssub.s32 1, %s8
  %s11 = scalar_select 0, %s10, %s8
  $region1: #{actor_forward.1} parent=0
    #allocation3 [shape = 'u8[524288]{0}', space=vmem, size = 0x80000, scoped, tag = 'input window, operand 1, single buffered']
    #allocation4 [shape = 's32[1]{0}', space=sflag, size = 0x4, scoped, tag = 'scoped memory for actor_forward.1']
    #allocation5 [shape = 's32[1]{0}', space=sflag, size = 0x4, scoped, tag = 'scoped memory for actor_forward.1']
    #allocation6 [shape = 'u8[32768]{0}', space=vmem, size = 0x8000, scoped, tag = 'input window, operand 5, single buffered']
    #allocation7 [shape = 's32[1]{0}', space=sflag, size = 0x4, scoped, tag = 'scoped memory for actor_forward.1']
    #allocation8 [shape = 'u8[8192]{0}', space=vmem, size = 0x2000, scoped, tag = 'output window, operand 0, single buffered']
    %12 = vsyncpa [#allocation4], 0
    %13 = vsyncpa [#allocation7], 0
    %14 = vsyncpa [#allocation5], 0
    // Predicated region
    $region2: #{actor_forward.1} parent=1 // pred_check
      _
    $region3: #{actor_forward.1} parent=1 // pred_check_branch
      %16 = sbr.rel (0) target = $region5
    $region4: #{actor_forward.1} parent=1 // pred_region
      _
    $region5: #{actor_forward.1} parent=1 // pred_fallthru
      _
    // Predicated region
    $region6: #{actor_forward.1} parent=1 // pred_check
      _
    $region7: #{actor_forward.1} parent=1 // pred_check_branch
      %18 = sbr.rel (0) target = $region9
    $region8: #{actor_forward.1} parent=1 // pred_region
      %s20 = ssub.s32 16384, 16384
      %21 = vsyncadd [#allocation4], %s20
      %s22 = sshll.u32 [#allocation3], 4
      %s23 = int_to_ptr.vmem [resolvable:$true] %s22
      %28 = dma.hbm_to_vmem [thread:$0]  %s1, 16384, %s23, [#allocation4], 128, 128, 8
    $region9: #{actor_forward.1} parent=1 // pred_fallthru
      _
    // Predicated region
    $region10: #{actor_forward.1} parent=1 // pred_check
      _
    $region11: #{actor_forward.1} parent=1 // pred_check_branch
      %30 = sbr.rel (0) target = $region13
    $region12: #{actor_forward.1} parent=1 // pred_region
      _
    $region13: #{actor_forward.1} parent=1 // pred_fallthru
      _
    // Predicated region
    $region14: #{actor_forward.1} parent=1 // pred_check
      _
    $region15: #{actor_forward.1} parent=1 // pred_check_branch
      %32 = sbr.rel (0) target = $region17
    $region16: #{actor_forward.1} parent=1 // pred_region
      _
    $region17: #{actor_forward.1} parent=1 // pred_fallthru
      _
    // Predicated region
    $region18: #{actor_forward.1} parent=1 // pred_check
      _
    $region19: #{actor_forward.1} parent=1 // pred_check_branch
      %34 = sbr.rel (0) target = $region21
    $region20: #{actor_forward.1} parent=1 // pred_region
      _
    $region21: #{actor_forward.1} parent=1 // pred_fallthru
      _
    // Predicated region
    $region22: #{actor_forward.1} parent=1 // pred_check
      _
    $region23: #{actor_forward.1} parent=1 // pred_check_branch
      %36 = sbr.rel (0) target = $region25
    $region24: #{actor_forward.1} parent=1 // pred_region
      %s38 = ssub.s32 1024, 1024
      %39 = vsyncadd [#allocation7], %s38
      %s40 = sshll.u32 [#allocation6], 4
      %s41 = int_to_ptr.vmem [resolvable:$true] %s40
      %46 = dma.hbm_to_vmem [thread:$0]  %s5, 1024, %s41, [#allocation7], 64, 64, 4
    $region25: #{actor_forward.1} parent=1 // pred_fallthru
      _
    // Predicated region
    $region26: #{actor_forward.1} parent=1 // pred_check
      _
    $region27: #{actor_forward.1} parent=1 // pred_check_branch
      %48 = sbr.rel (0) target = $region29
    $region28: #{actor_forward.1} parent=1 // pred_region
      _
    $region29: #{actor_forward.1} parent=1 // pred_fallthru
      _
    // Predicated region
    $region30: #{actor_forward.1} parent=1 // pred_check
      _
    $region31: #{actor_forward.1} parent=1 // pred_check_branch
      %50 = sbr.rel (0) target = $region33
    $region32: #{actor_forward.1} parent=1 // pred_region
      %51 = dma.done [#allocation4], 16384
    $region33: #{actor_forward.1} parent=1 // pred_fallthru
      _
    // Predicated region
    $region34: #{actor_forward.1} parent=1 // pred_check
      _
    $region35: #{actor_forward.1} parent=1 // pred_check_branch
      %53 = sbr.rel (0) target = $region37
    $region36: #{actor_forward.1} parent=1 // pred_region
      %54 = dma.done [#allocation7], 1024
    $region37: #{actor_forward.1} parent=1 // pred_fallthru
      _
    %p56 = scmp.eq.s32.totalorder 0, 0
    // Predicated region
    $region38: #{actor_forward.1} parent=1 // pred_check
      %p57 = pneg %p56
    $region39: #{actor_forward.1} parent=1 // pred_check_branch
      %59 = sbr.rel (%p57) target = $region41
    $region40: #{actor_forward.1} parent=1 // pred_region
      %60 = vst [vmem:[#allocation2] sm:$0xff] 0.0
      %61 = vst [vmem:[#allocation2 + $0x8] sm:$0xff] 0.0
      %62 = vst [vmem:[#allocation2 + $0x10] sm:$0xff] 0.0
      %63 = vst [vmem:[#allocation2 + $0x18] sm:$0xff] 0.0
    $region41: #{actor_forward.1} parent=1 // pred_fallthru
      _
    %v64 = vld [vmem:[%s0] sm:$0xff]
    %v65 = vld [vmem:[%s0 + $0x8] sm:$0xff]
    %v66 = vld [vmem:[%s0 + $0x10] sm:$0xff]
    %v67 = vld [vmem:[%s0 + $0x18] sm:$0xff]
    %v68 = vld [vmem:[%s0 + $0x20] sm:$0xff]
    %v69 = vld [vmem:[%s0 + $0x28] sm:$0xff]
    %v70 = vld [vmem:[%s0 + $0x30] sm:$0xff]
    %v71 = vld [vmem:[%s0 + $0x38] sm:$0xff]
    %v72 = vld [vmem:[%s0 + $0x40] sm:$0xff]
    %v73 = vld [vmem:[%s0 + $0x48] sm:$0xff]
    %v74 = vld [vmem:[%s0 + $0x50] sm:$0xff]
    %v75 = vld [vmem:[%s0 + $0x58] sm:$0xff]
    %v76 = vld [vmem:[%s0 + $0x60] sm:$0xff]
    %v77 = vld [vmem:[%s0 + $0x68] sm:$0xff]
    %v78 = vld [vmem:[%s0 + $0x70] sm:$0xff]
    %v79 = vld [vmem:[%s0 + $0x78] sm:$0xff]
    %v96 = vcombine.low %v64, %v66
    %v97 = vcombine.high %v64, %v66
    %v98 = vcombine.low %v68, %v70
    %v99 = vcombine.high %v68, %v70
    %v101 = vunpack.c.l.s4 1983009808
    %v102 = vunpack.c.0.s8 %v101
    %v103 = vlaneseq
    %v104 = vshrl.u32 %v103, 7
    %v105 = vsub.s32 %v102, %v104
    %v106 = vrot.slane %v96, %v105
    %v108 = vunpack.c.l.s4 1983009808
    %v109 = vunpack.c.0.s8 %v108
    %v110 = vlaneseq
    %v111 = vshrl.u32 %v110, 7
    %v112 = vsub.s32 %v109, %v111
    %v113 = vrot.slane %v97, %v112
    %v115 = vunpack.c.l.s4 1983009808
    %v116 = vunpack.c.0.s8 %v115
    %v117 = vlaneseq
    %v118 = vshrl.u32 %v117, 7
    %v119 = vsub.s32 %v116, %v118
    %v120 = vrot.slane %v98, %v119
    %v122 = vunpack.c.l.s4 1983009808
    %v123 = vunpack.c.0.s8 %v122
    %v124 = vlaneseq
    %v125 = vshrl.u32 %v124, 7
    %v126 = vsub.s32 %v123, %v125
    %v127 = vrot.slane %v99, %v126
    %v128 = vcombine.low %v106, %v120
    %v129 = vcombine.high %v106, %v120
    %v130 = vcombine.low %v113, %v127
    %v131 = vcombine.high %v113, %v127
    %v132 = vcombine.low %v65, %v67
    %v133 = vcombine.high %v65, %v67
    %v134 = vcombine.low %v69, %v71
    %v135 = vcombine.high %v69, %v71
    %v137 = vunpack.c.l.s4 1983009808
    %v138 = vunpack.c.0.s8 %v137
    %v139 = vlaneseq
    %v140 = vshrl.u32 %v139, 7
    %v141 = vsub.s32 %v138, %v140
    %v142 = vrot.slane %v132, %v141
    %v144 = vunpack.c.l.s4 1983009808
    %v145 = vunpack.c.0.s8 %v144
    %v146 = vlaneseq
    %v147 = vshrl.u32 %v146, 7
    %v148 = vsub.s32 %v145, %v147
    %v149 = vrot.slane %v133, %v148
    %v151 = vunpack.c.l.s4 1983009808
    %v152 = vunpack.c.0.s8 %v151
    %v153 = vlaneseq
    %v154 = vshrl.u32 %v153, 7
    %v155 = vsub.s32 %v152, %v154
    %v156 = vrot.slane %v134, %v155
    %v158 = vunpack.c.l.s4 1983009808
    %v159 = vunpack.c.0.s8 %v158
    %v160 = vlaneseq
    %v161 = vshrl.u32 %v160, 7
    %v162 = vsub.s32 %v159, %v161
    %v163 = vrot.slane %v135, %v162
    %v164 = vcombine.low %v142, %v156
    %v165 = vcombine.high %v142, %v156
    %v166 = vcombine.low %v149, %v163
    %v167 = vcombine.high %v149, %v163
    %v168 = vcombine.low %v72, %v74
    %v169 = vcombine.high %v72, %v74
    %v170 = vcombine.low %v76, %v78
    %v171 = vcombine.high %v76, %v78
    %v173 = vunpack.c.l.s4 1983009808
    %v174 = vunpack.c.0.s8 %v173
    %v175 = vlaneseq
    %v176 = vshrl.u32 %v175, 7
    %v177 = vsub.s32 %v174, %v176
    %v178 = vrot.slane %v168, %v177
    %v180 = vunpack.c.l.s4 1983009808
    %v181 = vunpack.c.0.s8 %v180
    %v182 = vlaneseq
    %v183 = vshrl.u32 %v182, 7
    %v184 = vsub.s32 %v181, %v183
    %v185 = vrot.slane %v169, %v184
    %v187 = vunpack.c.l.s4 1983009808
    %v188 = vunpack.c.0.s8 %v187
    %v189 = vlaneseq
    %v190 = vshrl.u32 %v189, 7
    %v191 = vsub.s32 %v188, %v190
    %v192 = vrot.slane %v170, %v191
    %v194 = vunpack.c.l.s4 1983009808
    %v195 = vunpack.c.0.s8 %v194
    %v196 = vlaneseq
    %v197 = vshrl.u32 %v196, 7
    %v198 = vsub.s32 %v195, %v197
    %v199 = vrot.slane %v171, %v198
    %v200 = vcombine.low %v178, %v192
    %v201 = vcombine.high %v178, %v192
    %v202 = vcombine.low %v185, %v199
    %v203 = vcombine.high %v185, %v199
    %v204 = vcombine.low %v73, %v75
    %v205 = vcombine.high %v73, %v75
    %v206 = vcombine.low %v77, %v79
    %v207 = vcombine.high %v77, %v79
    %v209 = vunpack.c.l.s4 1983009808
    %v210 = vunpack.c.0.s8 %v209
    %v211 = vlaneseq
    %v212 = vshrl.u32 %v211, 7
    %v213 = vsub.s32 %v210, %v212
    %v214 = vrot.slane %v204, %v213
    %v216 = vunpack.c.l.s4 1983009808
    %v217 = vunpack.c.0.s8 %v216
    %v218 = vlaneseq
    %v219 = vshrl.u32 %v218, 7
    %v220 = vsub.s32 %v217, %v219
    %v221 = vrot.slane %v205, %v220
    %v223 = vunpack.c.l.s4 1983009808
    %v224 = vunpack.c.0.s8 %v223
    %v225 = vlaneseq
    %v226 = vshrl.u32 %v225, 7
    %v227 = vsub.s32 %v224, %v226
    %v228 = vrot.slane %v206, %v227
    %v230 = vunpack.c.l.s4 1983009808
    %v231 = vunpack.c.0.s8 %v230
    %v232 = vlaneseq
    %v233 = vshrl.u32 %v232, 7
    %v234 = vsub.s32 %v231, %v233
    %v235 = vrot.slane %v207, %v234
    %v236 = vcombine.low %v214, %v228
    %v237 = vcombine.high %v214, %v228
    %v238 = vcombine.low %v221, %v235
    %v239 = vcombine.high %v221, %v235
    %v256 = vpack.c.bf16 %v200, %v128
    %v257 = vpack.c.bf16 %v201, %v129
    %v258 = vpack.c.bf16 %v202, %v130
    %v259 = vpack.c.bf16 %v203, %v131
    %v260 = vpack.c.bf16 %v236, %v164
    %v261 = vpack.c.bf16 %v237, %v165
    %v262 = vpack.c.bf16 %v238, %v166
    %v263 = vpack.c.bf16 %v239, %v167
    %v264 = vld [vmem:[#allocation2] sm:$0xff]
    %v265 = vld [vmem:[#allocation2 + $0x8] sm:$0xff]
    %v266 = vld [vmem:[#allocation2 + $0x10] sm:$0xff]
    %v267 = vld [vmem:[#allocation2 + $0x18] sm:$0xff]
    %v268 = vld [vmem:[#allocation3] sm:$0xff]
    %v269 = vld [vmem:[#allocation3 + $0x8] sm:$0xff]
    %v270 = vld [vmem:[#allocation3 + $0x10] sm:$0xff]
    %v271 = vld [vmem:[#allocation3 + $0x18] sm:$0xff]
    %v272 = vld [vmem:[#allocation3 + $0x20] sm:$0xff]
    %v273 = vld [vmem:[#allocation3 + $0x28] sm:$0xff]
    %v274 = vld [vmem:[#allocation3 + $0x30] sm:$0xff]
    %v275 = vld [vmem:[#allocation3 + $0x38] sm:$0xff]
    %v276 = vld [vmem:[#allocation3 + $0x40] sm:$0xff]
    %v277 = vld [vmem:[#allocation3 + $0x48] sm:$0xff]
    %v278 = vld [vmem:[#allocation3 + $0x50] sm:$0xff]
    %v279 = vld [vmem:[#allocation3 + $0x58] sm:$0xff]
    %v280 = vld [vmem:[#allocation3 + $0x60] sm:$0xff]
    %v281 = vld [vmem:[#allocation3 + $0x68] sm:$0xff]
    %v282 = vld [vmem:[#allocation3 + $0x70] sm:$0xff]
    %v283 = vld [vmem:[#allocation3 + $0x78] sm:$0xff]
    %v284 = vld [vmem:[#allocation3 + $0x80] sm:$0xff]
    %v285 = vld [vmem:[#allocation3 + $0x88] sm:$0xff]
    %v286 = vld [vmem:[#allocation3 + $0x90] sm:$0xff]
    %v287 = vld [vmem:[#allocation3 + $0x98] sm:$0xff]
    %v288 = vld [vmem:[#allocation3 + $0xa0] sm:$0xff]
    %v289 = vld [vmem:[#allocation3 + $0xa8] sm:$0xff]
    %v290 = vld [vmem:[#allocation3 + $0xb0] sm:$0xff]
    %v291 = vld [vmem:[#allocation3 + $0xb8] sm:$0xff]
    %v292 = vld [vmem:[#allocation3 + $0xc0] sm:$0xff]
    %v293 = vld [vmem:[#allocation3 + $0xc8] sm:$0xff]
    %v294 = vld [vmem:[#allocation3 + $0xd0] sm:$0xff]
    %v295 = vld [vmem:[#allocation3 + $0xd8] sm:$0xff]
    %v296 = vld [vmem:[#allocation3 + $0xe0] sm:$0xff]
    %v297 = vld [vmem:[#allocation3 + $0xe8] sm:$0xff]
    %v298 = vld [vmem:[#allocation3 + $0xf0] sm:$0xff]
    %v299 = vld [vmem:[#allocation3 + $0xf8] sm:$0xff]
    %v300 = vld [vmem:[#allocation3 + $0x100] sm:$0xff]
    %v301 = vld [vmem:[#allocation3 + $0x108] sm:$0xff]
    %v302 = vld [vmem:[#allocation3 + $0x110] sm:$0xff]
    %v303 = vld [vmem:[#allocation3 + $0x118] sm:$0xff]
    %v304 = vld [vmem:[#allocation3 + $0x120] sm:$0xff]
    %v305 = vld [vmem:[#allocation3 + $0x128] sm:$0xff]
    %v306 = vld [vmem:[#allocation3 + $0x130] sm:$0xff]
    %v307 = vld [vmem:[#allocation3 + $0x138] sm:$0xff]
    %v308 = vld [vmem:[#allocation3 + $0x140] sm:$0xff]
    %v309 = vld [vmem:[#allocation3 + $0x148] sm:$0xff]
    %v310 = vld [vmem:[#allocation3 + $0x150] sm:$0xff]
    %v311 = vld [vmem:[#allocation3 + $0x158] sm:$0xff]
    %v312 = vld [vmem:[#allocation3 + $0x160] sm:$0xff]
    %v313 = vld [vmem:[#allocation3 + $0x168] sm:$0xff]
    %v314 = vld [vmem:[#allocation3 + $0x170] sm:$0xff]
    %v315 = vld [vmem:[#allocation3 + $0x178] sm:$0xff]
    %v316 = vld [vmem:[#allocation3 + $0x180] sm:$0xff]
    %v317 = vld [vmem:[#allocation3 + $0x188] sm:$0xff]
    %v318 = vld [vmem:[#allocation3 + $0x190] sm:$0xff]
    %v319 = vld [vmem:[#allocation3 + $0x198] sm:$0xff]
    %v320 = vld [vmem:[#allocation3 + $0x1a0] sm:$0xff]
    %v321 = vld [vmem:[#allocation3 + $0x1a8] sm:$0xff]
    %v322 = vld [vmem:[#allocation3 + $0x1b0] sm:$0xff]
    %v323 = vld [vmem:[#allocation3 + $0x1b8] sm:$0xff]
    %v324 = vld [vmem:[#allocation3 + $0x1c0] sm:$0xff]
    %v325 = vld [vmem:[#allocation3 + $0x1c8] sm:$0xff]
    %v326 = vld [vmem:[#allocation3 + $0x1d0] sm:$0xff]
    %v327 = vld [vmem:[#allocation3 + $0x1d8] sm:$0xff]
    %v328 = vld [vmem:[#allocation3 + $0x1e0] sm:$0xff]
    %v329 = vld [vmem:[#allocation3 + $0x1e8] sm:$0xff]
    %v330 = vld [vmem:[#allocation3 + $0x1f0] sm:$0xff]
    %v331 = vld [vmem:[#allocation3 + $0x1f8] sm:$0xff]
    %v332 = vld [vmem:[#allocation3 + $0x200] sm:$0xff]
    %v333 = vld [vmem:[#allocation3 + $0x208] sm:$0xff]
    %v334 = vld [vmem:[#allocation3 + $0x210] sm:$0xff]
    %v335 = vld [vmem:[#allocation3 + $0x218] sm:$0xff]
    %v336 = vld [vmem:[#allocation3 + $0x220] sm:$0xff]
    %v337 = vld [vmem:[#allocation3 + $0x228] sm:$0xff]
    %v338 = vld [vmem:[#allocation3 + $0x230] sm:$0xff]
    %v339 = vld [vmem:[#allocation3 + $0x238] sm:$0xff]
    %v340 = vld [vmem:[#allocation3 + $0x240] sm:$0xff]
    %v341 = vld [vmem:[#allocation3 + $0x248] sm:$0xff]
    %v342 = vld [vmem:[#allocation3 + $0x250] sm:$0xff]
    %v343 = vld [vmem:[#allocation3 + $0x258] sm:$0xff]
    %v344 = vld [vmem:[#allocation3 + $0x260] sm:$0xff]
    %v345 = vld [vmem:[#allocation3 + $0x268] sm:$0xff]
    %v346 = vld [vmem:[#allocation3 + $0x270] sm:$0xff]
    %v347 = vld [vmem:[#allocation3 + $0x278] sm:$0xff]
    %v348 = vld [vmem:[#allocation3 + $0x280] sm:$0xff]
    %v349 = vld [vmem:[#allocation3 + $0x288] sm:$0xff]
    %v350 = vld [vmem:[#allocation3 + $0x290] sm:$0xff]
    %v351 = vld [vmem:[#allocation3 + $0x298] sm:$0xff]
    %v352 = vld [vmem:[#allocation3 + $0x2a0] sm:$0xff]
    %v353 = vld [vmem:[#allocation3 + $0x2a8] sm:$0xff]
    %v354 = vld [vmem:[#allocation3 + $0x2b0] sm:$0xff]
    %v355 = vld [vmem:[#allocation3 + $0x2b8] sm:$0xff]
    %v356 = vld [vmem:[#allocation3 + $0x2c0] sm:$0xff]
    %v357 = vld [vmem:[#allocation3 + $0x2c8] sm:$0xff]
    %v358 = vld [vmem:[#allocation3 + $0x2d0] sm:$0xff]
    %v359 = vld [vmem:[#allocation3 + $0x2d8] sm:$0xff]
    %v360 = vld [vmem:[#allocation3 + $0x2e0] sm:$0xff]
    %v361 = vld [vmem:[#allocation3 + $0x2e8] sm:$0xff]
    %v362 = vld [vmem:[#allocation3 + $0x2f0] sm:$0xff]
    %v363 = vld [vmem:[#allocation3 + $0x2f8] sm:$0xff]
    %v364 = vld [vmem:[#allocation3 + $0x300] sm:$0xff]
    %v365 = vld [vmem:[#allocation3 + $0x308] sm:$0xff]
    %v366 = vld [vmem:[#allocation3 + $0x310] sm:$0xff]
    %v367 = vld [vmem:[#allocation3 + $0x318] sm:$0xff]
    %v368 = vld [vmem:[#allocation3 + $0x320] sm:$0xff]
    %v369 = vld [vmem:[#allocation3 + $0x328] sm:$0xff]
    %v370 = vld [vmem:[#allocation3 + $0x330] sm:$0xff]
    %v371 = vld [vmem:[#allocation3 + $0x338] sm:$0xff]
    %v372 = vld [vmem:[#allocation3 + $0x340] sm:$0xff]
    %v373 = vld [vmem:[#allocation3 + $0x348] sm:$0xff]
    %v374 = vld [vmem:[#allocation3 + $0x350] sm:$0xff]
    %v375 = vld [vmem:[#allocation3 + $0x358] sm:$0xff]
    %v376 = vld [vmem:[#allocation3 + $0x360] sm:$0xff]
    %v377 = vld [vmem:[#allocation3 + $0x368] sm:$0xff]
    %v378 = vld [vmem:[#allocation3 + $0x370] sm:$0xff]
    %v379 = vld [vmem:[#allocation3 + $0x378] sm:$0xff]
    %v380 = vld [vmem:[#allocation3 + $0x380] sm:$0xff]
    %v381 = vld [vmem:[#allocation3 + $0x388] sm:$0xff]
    %v382 = vld [vmem:[#allocation3 + $0x390] sm:$0xff]
    %v383 = vld [vmem:[#allocation3 + $0x398] sm:$0xff]
    %v384 = vld [vmem:[#allocation3 + $0x3a0] sm:$0xff]
    %v385 = vld [vmem:[#allocation3 + $0x3a8] sm:$0xff]
    %v386 = vld [vmem:[#allocation3 + $0x3b0] sm:$0xff]
    %v387 = vld [vmem:[#allocation3 + $0x3b8] sm:$0xff]
    %v388 = vld [vmem:[#allocation3 + $0x3c0] sm:$0xff]
    %v389 = vld [vmem:[#allocation3 + $0x3c8] sm:$0xff]
    %v390 = vld [vmem:[#allocation3 + $0x3d0] sm:$0xff]
    %v391 = vld [vmem:[#allocation3 + $0x3d8] sm:$0xff]
    %v392 = vld [vmem:[#allocation3 + $0x3e0] sm:$0xff]
    %v393 = vld [vmem:[#allocation3 + $0x3e8] sm:$0xff]
    %v394 = vld [vmem:[#allocation3 + $0x3f0] sm:$0xff]
    %v395 = vld [vmem:[#allocation3 + $0x3f8] sm:$0xff]
    %v524 = vunpack.c.l.b16 %v268
    %v525 = vunpack.c.h.b16 %v268
    %v526 = vunpack.c.l.b16 %v269
    %v527 = vunpack.c.h.b16 %v269
    %v528 = vunpack.c.l.b16 %v270
    %v529 = vunpack.c.h.b16 %v270
    %v530 = vunpack.c.l.b16 %v271
    %v531 = vunpack.c.h.b16 %v271
    %v532 = vunpack.c.l.b16 %v272
    %v533 = vunpack.c.h.b16 %v272
    %v534 = vunpack.c.l.b16 %v273
    %v535 = vunpack.c.h.b16 %v273
    %v536 = vunpack.c.l.b16 %v274
    %v537 = vunpack.c.h.b16 %v274
    %v538 = vunpack.c.l.b16 %v275
    %v539 = vunpack.c.h.b16 %v275
    %v540 = vunpack.c.l.b16 %v276
    %v541 = vunpack.c.h.b16 %v276
    %v542 = vunpack.c.l.b16 %v277
    %v543 = vunpack.c.h.b16 %v277
    %v544 = vunpack.c.l.b16 %v278
    %v545 = vunpack.c.h.b16 %v278
    %v546 = vunpack.c.l.b16 %v279
    %v547 = vunpack.c.h.b16 %v279
    %v548 = vunpack.c.l.b16 %v280
    %v549 = vunpack.c.h.b16 %v280
    %v550 = vunpack.c.l.b16 %v281
    %v551 = vunpack.c.h.b16 %v281
    %v552 = vunpack.c.l.b16 %v282
    %v553 = vunpack.c.h.b16 %v282
    %v554 = vunpack.c.l.b16 %v283
    %v555 = vunpack.c.h.b16 %v283
    %v556 = vunpack.c.l.b16 %v284
    %v557 = vunpack.c.h.b16 %v284
    %v558 = vunpack.c.l.b16 %v285
    %v559 = vunpack.c.h.b16 %v285
    %v560 = vunpack.c.l.b16 %v286
    %v561 = vunpack.c.h.b16 %v286
    %v562 = vunpack.c.l.b16 %v287
    %v563 = vunpack.c.h.b16 %v287
    %v564 = vunpack.c.l.b16 %v288
    %v565 = vunpack.c.h.b16 %v288
    %v566 = vunpack.c.l.b16 %v289
    %v567 = vunpack.c.h.b16 %v289
    %v568 = vunpack.c.l.b16 %v290
    %v569 = vunpack.c.h.b16 %v290
    %v570 = vunpack.c.l.b16 %v291
    %v571 = vunpack.c.h.b16 %v291
    %v572 = vunpack.c.l.b16 %v292
    %v573 = vunpack.c.h.b16 %v292
    %v574 = vunpack.c.l.b16 %v293
    %v575 = vunpack.c.h.b16 %v293
    %v576 = vunpack.c.l.b16 %v294
    %v577 = vunpack.c.h.b16 %v294
    %v578 = vunpack.c.l.b16 %v295
    %v579 = vunpack.c.h.b16 %v295
    %v580 = vunpack.c.l.b16 %v296
    %v581 = vunpack.c.h.b16 %v296
    %v582 = vunpack.c.l.b16 %v297
    %v583 = vunpack.c.h.b16 %v297
    %v584 = vunpack.c.l.b16 %v298
    %v585 = vunpack.c.h.b16 %v298
    %v586 = vunpack.c.l.b16 %v299
    %v587 = vunpack.c.h.b16 %v299
    %v588 = vunpack.c.l.b16 %v300
    %v589 = vunpack.c.h.b16 %v300
    %v590 = vunpack.c.l.b16 %v301
    %v591 = vunpack.c.h.b16 %v301
    %v592 = vunpack.c.l.b16 %v302
    %v593 = vunpack.c.h.b16 %v302
    %v594 = vunpack.c.l.b16 %v303
    %v595 = vunpack.c.h.b16 %v303
    %v596 = vunpack.c.l.b16 %v304
    %v597 = vunpack.c.h.b16 %v304
    %v598 = vunpack.c.l.b16 %v305
    %v599 = vunpack.c.h.b16 %v305
    %v600 = vunpack.c.l.b16 %v306
    %v601 = vunpack.c.h.b16 %v306
    %v602 = vunpack.c.l.b16 %v307
    %v603 = vunpack.c.h.b16 %v307
    %v604 = vunpack.c.l.b16 %v308
    %v605 = vunpack.c.h.b16 %v308
    %v606 = vunpack.c.l.b16 %v309
    %v607 = vunpack.c.h.b16 %v309
    %v608 = vunpack.c.l.b16 %v310
    %v609 = vunpack.c.h.b16 %v310
    %v610 = vunpack.c.l.b16 %v311
    %v611 = vunpack.c.h.b16 %v311
    %v612 = vunpack.c.l.b16 %v312
    %v613 = vunpack.c.h.b16 %v312
    %v614 = vunpack.c.l.b16 %v313
    %v615 = vunpack.c.h.b16 %v313
    %v616 = vunpack.c.l.b16 %v314
    %v617 = vunpack.c.h.b16 %v314
    %v618 = vunpack.c.l.b16 %v315
    %v619 = vunpack.c.h.b16 %v315
    %v620 = vunpack.c.l.b16 %v316
    %v621 = vunpack.c.h.b16 %v316
    %v622 = vunpack.c.l.b16 %v317
    %v623 = vunpack.c.h.b16 %v317
    %v624 = vunpack.c.l.b16 %v318
    %v625 = vunpack.c.h.b16 %v318
    %v626 = vunpack.c.l.b16 %v319
    %v627 = vunpack.c.h.b16 %v319
    %v628 = vunpack.c.l.b16 %v320
    %v629 = vunpack.c.h.b16 %v320
    %v630 = vunpack.c.l.b16 %v321
    %v631 = vunpack.c.h.b16 %v321
    %v632 = vunpack.c.l.b16 %v322
    %v633 = vunpack.c.h.b16 %v322
    %v634 = vunpack.c.l.b16 %v323
    %v635 = vunpack.c.h.b16 %v323
    %v636 = vunpack.c.l.b16 %v324
    %v637 = vunpack.c.h.b16 %v324
    %v638 = vunpack.c.l.b16 %v325
    %v639 = vunpack.c.h.b16 %v325
    %v640 = vunpack.c.l.b16 %v326
    %v641 = vunpack.c.h.b16 %v326
    %v642 = vunpack.c.l.b16 %v327
    %v643 = vunpack.c.h.b16 %v327
    %v644 = vunpack.c.l.b16 %v328
    %v645 = vunpack.c.h.b16 %v328
    %v646 = vunpack.c.l.b16 %v329
    %v647 = vunpack.c.h.b16 %v329
    %v648 = vunpack.c.l.b16 %v330
    %v649 = vunpack.c.h.b16 %v330
    %v650 = vunpack.c.l.b16 %v331
    %v651 = vunpack.c.h.b16 %v331
    %v652 = vunpack.c.l.b16 %v332
    %v653 = vunpack.c.h.b16 %v332
    %v654 = vunpack.c.l.b16 %v333
    %v655 = vunpack.c.h.b16 %v333
    %v656 = vunpack.c.l.b16 %v334
    %v657 = vunpack.c.h.b16 %v334
    %v658 = vunpack.c.l.b16 %v335
    %v659 = vunpack.c.h.b16 %v335
    %v660 = vunpack.c.l.b16 %v336
    %v661 = vunpack.c.h.b16 %v336
    %v662 = vunpack.c.l.b16 %v337
    %v663 = vunpack.c.h.b16 %v337
    %v664 = vunpack.c.l.b16 %v338
    %v665 = vunpack.c.h.b16 %v338
    %v666 = vunpack.c.l.b16 %v339
    %v667 = vunpack.c.h.b16 %v339
    %v668 = vunpack.c.l.b16 %v340
    %v669 = vunpack.c.h.b16 %v340
    %v670 = vunpack.c.l.b16 %v341
    %v671 = vunpack.c.h.b16 %v341
    %v672 = vunpack.c.l.b16 %v342
    %v673 = vunpack.c.h.b16 %v342
    %v674 = vunpack.c.l.b16 %v343
    %v675 = vunpack.c.h.b16 %v343
    %v676 = vunpack.c.l.b16 %v344
    %v677 = vunpack.c.h.b16 %v344
    %v678 = vunpack.c.l.b16 %v345
    %v679 = vunpack.c.h.b16 %v345
    %v680 = vunpack.c.l.b16 %v346
    %v681 = vunpack.c.h.b16 %v346
    %v682 = vunpack.c.l.b16 %v347
    %v683 = vunpack.c.h.b16 %v347
    %v684 = vunpack.c.l.b16 %v348
    %v685 = vunpack.c.h.b16 %v348
    %v686 = vunpack.c.l.b16 %v349
    %v687 = vunpack.c.h.b16 %v349
    %v688 = vunpack.c.l.b16 %v350
    %v689 = vunpack.c.h.b16 %v350
    %v690 = vunpack.c.l.b16 %v351
    %v691 = vunpack.c.h.b16 %v351
    %v692 = vunpack.c.l.b16 %v352
    %v693 = vunpack.c.h.b16 %v352
    %v694 = vunpack.c.l.b16 %v353
    %v695 = vunpack.c.h.b16 %v353
    %v696 = vunpack.c.l.b16 %v354
    %v697 = vunpack.c.h.b16 %v354
    %v698 = vunpack.c.l.b16 %v355
    %v699 = vunpack.c.h.b16 %v355
    %v700 = vunpack.c.l.b16 %v356
    %v701 = vunpack.c.h.b16 %v356
    %v702 = vunpack.c.l.b16 %v357
    %v703 = vunpack.c.h.b16 %v357
    %v704 = vunpack.c.l.b16 %v358
    %v705 = vunpack.c.h.b16 %v358
    %v706 = vunpack.c.l.b16 %v359
    %v707 = vunpack.c.h.b16 %v359
    %v708 = vunpack.c.l.b16 %v360
    %v709 = vunpack.c.h.b16 %v360
    %v710 = vunpack.c.l.b16 %v361
    %v711 = vunpack.c.h.b16 %v361
    %v712 = vunpack.c.l.b16 %v362
    %v713 = vunpack.c.h.b16 %v362
    %v714 = vunpack.c.l.b16 %v363
    %v715 = vunpack.c.h.b16 %v363
    %v716 = vunpack.c.l.b16 %v364
    %v717 = vunpack.c.h.b16 %v364
    %v718 = vunpack.c.l.b16 %v365
    %v719 = vunpack.c.h.b16 %v365
    %v720 = vunpack.c.l.b16 %v366
    %v721 = vunpack.c.h.b16 %v366
    %v722 = vunpack.c.l.b16 %v367
    %v723 = vunpack.c.h.b16 %v367
    %v724 = vunpack.c.l.b16 %v368
    %v725 = vunpack.c.h.b16 %v368
    %v726 = vunpack.c.l.b16 %v369
    %v727 = vunpack.c.h.b16 %v369
    %v728 = vunpack.c.l.b16 %v370
    %v729 = vunpack.c.h.b16 %v370
    %v730 = vunpack.c.l.b16 %v371
    %v731 = vunpack.c.h.b16 %v371
    %v732 = vunpack.c.l.b16 %v372
    %v733 = vunpack.c.h.b16 %v372
    %v734 = vunpack.c.l.b16 %v373
    %v735 = vunpack.c.h.b16 %v373
    %v736 = vunpack.c.l.b16 %v374
    %v737 = vunpack.c.h.b16 %v374
    %v738 = vunpack.c.l.b16 %v375
    %v739 = vunpack.c.h.b16 %v375
    %v740 = vunpack.c.l.b16 %v376
    %v741 = vunpack.c.h.b16 %v376
    %v742 = vunpack.c.l.b16 %v377
    %v743 = vunpack.c.h.b16 %v377
    %v744 = vunpack.c.l.b16 %v378
    %v745 = vunpack.c.h.b16 %v378
    %v746 = vunpack.c.l.b16 %v379
    %v747 = vunpack.c.h.b16 %v379
    %v748 = vunpack.c.l.b16 %v380
    %v749 = vunpack.c.h.b16 %v380
    %v750 = vunpack.c.l.b16 %v381
    %v751 = vunpack.c.h.b16 %v381
    %v752 = vunpack.c.l.b16 %v382
    %v753 = vunpack.c.h.b16 %v382
    %v754 = vunpack.c.l.b16 %v383
    %v755 = vunpack.c.h.b16 %v383
    %v756 = vunpack.c.l.b16 %v384
    %v757 = vunpack.c.h.b16 %v384
    %v758 = vunpack.c.l.b16 %v385
    %v759 = vunpack.c.h.b16 %v385
    %v760 = vunpack.c.l.b16 %v386
    %v761 = vunpack.c.h.b16 %v386
    %v762 = vunpack.c.l.b16 %v387
    %v763 = vunpack.c.h.b16 %v387
    %v764 = vunpack.c.l.b16 %v388
    %v765 = vunpack.c.h.b16 %v388
    %v766 = vunpack.c.l.b16 %v389
    %v767 = vunpack.c.h.b16 %v389
    %v768 = vunpack.c.l.b16 %v390
    %v769 = vunpack.c.h.b16 %v390
    %v770 = vunpack.c.l.b16 %v391
    %v771 = vunpack.c.h.b16 %v391
    %v772 = vunpack.c.l.b16 %v392
    %v773 = vunpack.c.h.b16 %v392
    %v774 = vunpack.c.l.b16 %v393
    %v775 = vunpack.c.h.b16 %v393
    %v776 = vunpack.c.l.b16 %v394
    %v777 = vunpack.c.h.b16 %v394
    %v778 = vunpack.c.l.b16 %v395
    %v779 = vunpack.c.h.b16 %v395
    %v780 = vpack.c.b16 %v526, %v524
    %v781 = vpack.c.b16 %v527, %v525
    %v782 = vpack.c.b16 %v530, %v528
    %v783 = vpack.c.b16 %v531, %v529
    %v784 = vpack.c.b16 %v534, %v532
    %v785 = vpack.c.b16 %v535, %v533
    %v786 = vpack.c.b16 %v538, %v536
    %v787 = vpack.c.b16 %v539, %v537
    %v788 = vpack.c.b16 %v542, %v540
    %v789 = vpack.c.b16 %v543, %v541
    %v790 = vpack.c.b16 %v546, %v544
    %v791 = vpack.c.b16 %v547, %v545
    %v792 = vpack.c.b16 %v550, %v548
    %v793 = vpack.c.b16 %v551, %v549
    %v794 = vpack.c.b16 %v554, %v552
    %v795 = vpack.c.b16 %v555, %v553
    %v796 = vpack.c.b16 %v558, %v556
    %v797 = vpack.c.b16 %v559, %v557
    %v798 = vpack.c.b16 %v562, %v560
    %v799 = vpack.c.b16 %v563, %v561
    %v800 = vpack.c.b16 %v566, %v564
    %v801 = vpack.c.b16 %v567, %v565
    %v802 = vpack.c.b16 %v570, %v568
    %v803 = vpack.c.b16 %v571, %v569
    %v804 = vpack.c.b16 %v574, %v572
    %v805 = vpack.c.b16 %v575, %v573
    %v806 = vpack.c.b16 %v578, %v576
    %v807 = vpack.c.b16 %v579, %v577
    %v808 = vpack.c.b16 %v582, %v580
    %v809 = vpack.c.b16 %v583, %v581
    %v810 = vpack.c.b16 %v586, %v584
    %v811 = vpack.c.b16 %v587, %v585
    %v812 = vpack.c.b16 %v590, %v588
    %v813 = vpack.c.b16 %v591, %v589
    %v814 = vpack.c.b16 %v594, %v592
    %v815 = vpack.c.b16 %v595, %v593
    %v816 = vpack.c.b16 %v598, %v596
    %v817 = vpack.c.b16 %v599, %v597
    %v818 = vpack.c.b16 %v602, %v600
    %v819 = vpack.c.b16 %v603, %v601
    %v820 = vpack.c.b16 %v606, %v604
    %v821 = vpack.c.b16 %v607, %v605
    %v822 = vpack.c.b16 %v610, %v608
    %v823 = vpack.c.b16 %v611, %v609
    %v824 = vpack.c.b16 %v614, %v612
    %v825 = vpack.c.b16 %v615, %v613
    %v826 = vpack.c.b16 %v618, %v616
    %v827 = vpack.c.b16 %v619, %v617
    %v828 = vpack.c.b16 %v622, %v620
    %v829 = vpack.c.b16 %v623, %v621
    %v830 = vpack.c.b16 %v626, %v624
    %v831 = vpack.c.b16 %v627, %v625
    %v832 = vpack.c.b16 %v630, %v628
    %v833 = vpack.c.b16 %v631, %v629
    %v834 = vpack.c.b16 %v634, %v632
    %v835 = vpack.c.b16 %v635, %v633
    %v836 = vpack.c.b16 %v638, %v636
    %v837 = vpack.c.b16 %v639, %v637
    %v838 = vpack.c.b16 %v642, %v640
    %v839 = vpack.c.b16 %v643, %v641
    %v840 = vpack.c.b16 %v646, %v644
    %v841 = vpack.c.b16 %v647, %v645
    %v842 = vpack.c.b16 %v650, %v648
    %v843 = vpack.c.b16 %v651, %v649
    %v844 = vpack.c.b16 %v654, %v652
    %v845 = vpack.c.b16 %v655, %v653
    %v846 = vpack.c.b16 %v658, %v656
    %v847 = vpack.c.b16 %v659, %v657
    %v848 = vpack.c.b16 %v662, %v660
    %v849 = vpack.c.b16 %v663, %v661
    %v850 = vpack.c.b16 %v666, %v664
    %v851 = vpack.c.b16 %v667, %v665
    %v852 = vpack.c.b16 %v670, %v668
    %v853 = vpack.c.b16 %v671, %v669
    %v854 = vpack.c.b16 %v674, %v672
    %v855 = vpack.c.b16 %v675, %v673
    %v856 = vpack.c.b16 %v678, %v676
    %v857 = vpack.c.b16 %v679, %v677
    %v858 = vpack.c.b16 %v682, %v680
    %v859 = vpack.c.b16 %v683, %v681
    %v860 = vpack.c.b16 %v686, %v684
    %v861 = vpack.c.b16 %v687, %v685
    %v862 = vpack.c.b16 %v690, %v688
    %v863 = vpack.c.b16 %v691, %v689
    %v864 = vpack.c.b16 %v694, %v692
    %v865 = vpack.c.b16 %v695, %v693
    %v866 = vpack.c.b16 %v698, %v696
    %v867 = vpack.c.b16 %v699, %v697
    %v868 = vpack.c.b16 %v702, %v700
    %v869 = vpack.c.b16 %v703, %v701
    %v870 = vpack.c.b16 %v706, %v704
    %v871 = vpack.c.b16 %v707, %v705
    %v872 = vpack.c.b16 %v710, %v708
    %v873 = vpack.c.b16 %v711, %v709
    %v874 = vpack.c.b16 %v714, %v712
    %v875 = vpack.c.b16 %v715, %v713
    %v876 = vpack.c.b16 %v718, %v716
    %v877 = vpack.c.b16 %v719, %v717
    %v878 = vpack.c.b16 %v722, %v720
    %v879 = vpack.c.b16 %v723, %v721
    %v880 = vpack.c.b16 %v726, %v724
    %v881 = vpack.c.b16 %v727, %v725
    %v882 = vpack.c.b16 %v730, %v728
    %v883 = vpack.c.b16 %v731, %v729
    %v884 = vpack.c.b16 %v734, %v732
    %v885 = vpack.c.b16 %v735, %v733
    %v886 = vpack.c.b16 %v738, %v736
    %v887 = vpack.c.b16 %v739, %v737
    %v888 = vpack.c.b16 %v742, %v740
    %v889 = vpack.c.b16 %v743, %v741
    %v890 = vpack.c.b16 %v746, %v744
    %v891 = vpack.c.b16 %v747, %v745
    %v892 = vpack.c.b16 %v750, %v748
    %v893 = vpack.c.b16 %v751, %v749
    %v894 = vpack.c.b16 %v754, %v752
    %v895 = vpack.c.b16 %v755, %v753
    %v896 = vpack.c.b16 %v758, %v756
    %v897 = vpack.c.b16 %v759, %v757
    %v898 = vpack.c.b16 %v762, %v760
    %v899 = vpack.c.b16 %v763, %v761
    %v900 = vpack.c.b16 %v766, %v764
    %v901 = vpack.c.b16 %v767, %v765
    %v902 = vpack.c.b16 %v770, %v768
    %v903 = vpack.c.b16 %v771, %v769
    %v904 = vpack.c.b16 %v774, %v772
    %v905 = vpack.c.b16 %v775, %v773
    %v906 = vpack.c.b16 %v778, %v776
    %v907 = vpack.c.b16 %v779, %v777
    %1036 = vmatprep.subr.bf16.mxu0 %v781
    %1037 = vmatpush1.bf16.msra.mxu0 %v780
    %1038 = vmatprep.subr.bf16.mxu0 %v783
    %1039 = vmatpush1.bf16.msra.mxu0 %v782
    %1040 = vmatprep.subr.bf16.mxu0 %v785
    %1041 = vmatpush1.bf16.msra.mxu0 %v784
    %1042 = vmatprep.subr.bf16.mxu0 %v787
    %1043 = vmatpush1.bf16.msra.mxu0 %v786
    %1044 = vmatprep.subr.bf16.mxu0 %v789
    %1045 = vmatpush1.bf16.msra.mxu0 %v788
    %1046 = vmatprep.subr.bf16.mxu0 %v791
    %1047 = vmatpush1.bf16.msra.mxu0 %v790
    %1048 = vmatprep.subr.bf16.mxu0 %v793
    %1049 = vmatpush1.bf16.msra.mxu0 %v792
    %1050 = vmatprep.subr.bf16.mxu0 %v795
    %1051 = vmatpush1.bf16.msra.mxu0 %v794
    %1052 = vmatprep.subr.bf16.mxu0 %v797
    %1053 = vmatpush1.bf16.msra.mxu0 %v796
    %1054 = vmatprep.subr.bf16.mxu0 %v799
    %1055 = vmatpush1.bf16.msra.mxu0 %v798
    %1056 = vmatprep.subr.bf16.mxu0 %v801
    %1057 = vmatpush1.bf16.msra.mxu0 %v800
    %1058 = vmatprep.subr.bf16.mxu0 %v803
    %1059 = vmatpush1.bf16.msra.mxu0 %v802
    %1060 = vmatprep.subr.bf16.mxu0 %v805
    %1061 = vmatpush1.bf16.msra.mxu0 %v804
    %1062 = vmatprep.subr.bf16.mxu0 %v807
    %1063 = vmatpush1.bf16.msra.mxu0 %v806
    %1064 = vmatprep.subr.bf16.mxu0 %v809
    %1065 = vmatpush1.bf16.msra.mxu0 %v808
    %1066 = vmatprep.subr.bf16.mxu0 %v811
    %1067 = vmatpush1.bf16.msra.mxu0 %v810
    %1068 = vmatprep.mubr.bf16.mxu0 %v257
    %1069 = vmatmul.mubr.bf16.gmra.mrb[0].mxu0 %v256
    %v1070 = vpop.f32.mrb[0].mxu0
    %v1071 = vadd.f32 0.0, %v1070
    %v1072 = vpop.f32.mrb[0].mxu0
    %v1073 = vadd.f32 0.0, %v1072
    %v1074 = vpop.f32.mrb[0].mxu0
    %v1075 = vadd.f32 0.0, %v1074
    %v1076 = vpop.f32.mrb[0].mxu0
    %v1077 = vadd.f32 0.0, %v1076
    %1078 = vdwg.mxu0
    %1079 = vmatprep.subr.bf16.mxu0 %v813
    %1080 = vmatpush1.bf16.msra.mxu0 %v812
    %1081 = vmatprep.subr.bf16.mxu0 %v815
    %1082 = vmatpush1.bf16.msra.mxu0 %v814
    %1083 = vmatprep.subr.bf16.mxu0 %v817
    %1084 = vmatpush1.bf16.msra.mxu0 %v816
    %1085 = vmatprep.subr.bf16.mxu0 %v819
    %1086 = vmatpush1.bf16.msra.mxu0 %v818
    %1087 = vmatprep.subr.bf16.mxu0 %v821
    %1088 = vmatpush1.bf16.msra.mxu0 %v820
    %1089 = vmatprep.subr.bf16.mxu0 %v823
    %1090 = vmatpush1.bf16.msra.mxu0 %v822
    %1091 = vmatprep.subr.bf16.mxu0 %v825
    %1092 = vmatpush1.bf16.msra.mxu0 %v824
    %1093 = vmatprep.subr.bf16.mxu0 %v827
    %1094 = vmatpush1.bf16.msra.mxu0 %v826
    %1095 = vmatprep.subr.bf16.mxu0 %v829
    %1096 = vmatpush1.bf16.msra.mxu0 %v828
    %1097 = vmatprep.subr.bf16.mxu0 %v831
    %1098 = vmatpush1.bf16.msra.mxu0 %v830
    %1099 = vmatprep.subr.bf16.mxu0 %v833
    %1100 = vmatpush1.bf16.msra.mxu0 %v832
    %1101 = vmatprep.subr.bf16.mxu0 %v835
    %1102 = vmatpush1.bf16.msra.mxu0 %v834
    %1103 = vmatprep.subr.bf16.mxu0 %v837
    %1104 = vmatpush1.bf16.msra.mxu0 %v836
    %1105 = vmatprep.subr.bf16.mxu0 %v839
    %1106 = vmatpush1.bf16.msra.mxu0 %v838
    %1107 = vmatprep.subr.bf16.mxu0 %v841
    %1108 = vmatpush1.bf16.msra.mxu0 %v840
    %1109 = vmatprep.subr.bf16.mxu0 %v843
    %1110 = vmatpush1.bf16.msra.mxu0 %v842
    %1111 = vmatprep.mubr.bf16.mxu0 %v259
    %1112 = vmatmul.mubr.bf16.gmra.mrb[0].mxu0 %v258
    %v1113 = vpop.f32.mrb[0].mxu0
    %v1114 = vadd.f32 %v1071, %v1113
    %v1115 = vpop.f32.mrb[0].mxu0
    %v1116 = vadd.f32 %v1073, %v1115
    %v1117 = vpop.f32.mrb[0].mxu0
    %v1118 = vadd.f32 %v1075, %v1117
    %v1119 = vpop.f32.mrb[0].mxu0
    %v1120 = vadd.f32 %v1077, %v1119
    %1121 = vdwg.mxu0
    %1122 = vmatprep.subr.bf16.mxu0 %v845
    %1123 = vmatpush1.bf16.msra.mxu0 %v844
    %1124 = vmatprep.subr.bf16.mxu0 %v847
    %1125 = vmatpush1.bf16.msra.mxu0 %v846
    %1126 = vmatprep.subr.bf16.mxu0 %v849
    %1127 = vmatpush1.bf16.msra.mxu0 %v848
    %1128 = vmatprep.subr.bf16.mxu0 %v851
    %1129 = vmatpush1.bf16.msra.mxu0 %v850
    %1130 = vmatprep.subr.bf16.mxu0 %v853
    %1131 = vmatpush1.bf16.msra.mxu0 %v852
    %1132 = vmatprep.subr.bf16.mxu0 %v855
    %1133 = vmatpush1.bf16.msra.mxu0 %v854
    %1134 = vmatprep.subr.bf16.mxu0 %v857
    %1135 = vmatpush1.bf16.msra.mxu0 %v856
    %1136 = vmatprep.subr.bf16.mxu0 %v859
    %1137 = vmatpush1.bf16.msra.mxu0 %v858
    %1138 = vmatprep.subr.bf16.mxu0 %v861
    %1139 = vmatpush1.bf16.msra.mxu0 %v860
    %1140 = vmatprep.subr.bf16.mxu0 %v863
    %1141 = vmatpush1.bf16.msra.mxu0 %v862
    %1142 = vmatprep.subr.bf16.mxu0 %v865
    %1143 = vmatpush1.bf16.msra.mxu0 %v864
    %1144 = vmatprep.subr.bf16.mxu0 %v867
    %1145 = vmatpush1.bf16.msra.mxu0 %v866
    %1146 = vmatprep.subr.bf16.mxu0 %v869
    %1147 = vmatpush1.bf16.msra.mxu0 %v868
    %1148 = vmatprep.subr.bf16.mxu0 %v871
    %1149 = vmatpush1.bf16.msra.mxu0 %v870
    %1150 = vmatprep.subr.bf16.mxu0 %v873
    %1151 = vmatpush1.bf16.msra.mxu0 %v872
    %1152 = vmatprep.subr.bf16.mxu0 %v875
    %1153 = vmatpush1.bf16.msra.mxu0 %v874
    %1154 = vmatprep.mubr.bf16.mxu0 %v261
    %1155 = vmatmul.mubr.bf16.gmra.mrb[0].mxu0 %v260
    %v1156 = vpop.f32.mrb[0].mxu0
    %v1157 = vadd.f32 %v1114, %v1156
    %v1158 = vpop.f32.mrb[0].mxu0
    %v1159 = vadd.f32 %v1116, %v1158
    %v1160 = vpop.f32.mrb[0].mxu0
    %v1161 = vadd.f32 %v1118, %v1160
    %v1162 = vpop.f32.mrb[0].mxu0
    %v1163 = vadd.f32 %v1120, %v1162
    %1164 = vdwg.mxu0
    %1165 = vmatprep.subr.bf16.mxu0 %v877
    %1166 = vmatpush1.bf16.msra.mxu0 %v876
    %1167 = vmatprep.subr.bf16.mxu0 %v879
    %1168 = vmatpush1.bf16.msra.mxu0 %v878
    %1169 = vmatprep.subr.bf16.mxu0 %v881
    %1170 = vmatpush1.bf16.msra.mxu0 %v880
    %1171 = vmatprep.subr.bf16.mxu0 %v883
    %1172 = vmatpush1.bf16.msra.mxu0 %v882
    %1173 = vmatprep.subr.bf16.mxu0 %v885
    %1174 = vmatpush1.bf16.msra.mxu0 %v884
    %1175 = vmatprep.subr.bf16.mxu0 %v887
    %1176 = vmatpush1.bf16.msra.mxu0 %v886
    %1177 = vmatprep.subr.bf16.mxu0 %v889
    %1178 = vmatpush1.bf16.msra.mxu0 %v888
    %1179 = vmatprep.subr.bf16.mxu0 %v891
    %1180 = vmatpush1.bf16.msra.mxu0 %v890
    %1181 = vmatprep.subr.bf16.mxu0 %v893
    %1182 = vmatpush1.bf16.msra.mxu0 %v892
    %1183 = vmatprep.subr.bf16.mxu0 %v895
    %1184 = vmatpush1.bf16.msra.mxu0 %v894
    %1185 = vmatprep.subr.bf16.mxu0 %v897
    %1186 = vmatpush1.bf16.msra.mxu0 %v896
    %1187 = vmatprep.subr.bf16.mxu0 %v899
    %1188 = vmatpush1.bf16.msra.mxu0 %v898
    %1189 = vmatprep.subr.bf16.mxu0 %v901
    %1190 = vmatpush1.bf16.msra.mxu0 %v900
    %1191 = vmatprep.subr.bf16.mxu0 %v903
    %1192 = vmatpush1.bf16.msra.mxu0 %v902
    %1193 = vmatprep.subr.bf16.mxu0 %v905
    %1194 = vmatpush1.bf16.msra.mxu0 %v904
    %1195 = vmatprep.subr.bf16.mxu0 %v907
    %1196 = vmatpush1.bf16.msra.mxu0 %v906
    %1197 = vmatprep.mubr.bf16.mxu0 %v263
    %1198 = vmatmul.mubr.bf16.gmra.mrb[0].mxu0 %v262
    %v1199 = vpop.f32.mrb[0].mxu0
    %v1200 = vadd.f32 %v1157, %v1199
    %v1201 = vpop.f32.mrb[0].mxu0
    %v1202 = vadd.f32 %v1159, %v1201
    %v1203 = vpop.f32.mrb[0].mxu0
    %v1204 = vadd.f32 %v1161, %v1203
    %v1205 = vpop.f32.mrb[0].mxu0
    %v1206 = vadd.f32 %v1163, %v1205
    %1207 = vdwg.mxu0
    %v1208 = vadd.f32 %v264, %v1200
    %v1209 = vadd.f32 %v265, %v1202
    %v1210 = vadd.f32 %v266, %v1204
    %v1211 = vadd.f32 %v267, %v1206
    %1212 = vst [vmem:[#allocation2] sm:$0xff] %v1208
    %1213 = vst [vmem:[#allocation2 + $0x8] sm:$0xff] %v1209
    %1214 = vst [vmem:[#allocation2 + $0x10] sm:$0xff] %v1210
    %1215 = vst [vmem:[#allocation2 + $0x18] sm:$0xff] %v1211
    // Predicated region
    $region42: #{actor_forward.1} parent=1 // pred_check
      %p1216 = pneg %p56
    $region43: #{actor_forward.1} parent=1 // pred_check_branch
      %1218 = sbr.rel (%p1216) target = $region45
    $region44: #{actor_forward.1} parent=1 // pred_region
      %v1219 = vld [vmem:[#allocation2] sm:$0xff]
      %v1220 = vld [vmem:[#allocation2 + $0x8] sm:$0xff]
      %v1221 = vld [vmem:[#allocation2 + $0x10] sm:$0xff]
      %v1222 = vld [vmem:[#allocation2 + $0x18] sm:$0xff]
      %v1223 = vld [vmem:[%s2] sm:$0x3]
      %v1225 = vlaneseq
      %v1226 = vshrl.u32 %v1225, 7
      %v1227 = vsub.s32 0, %v1226
      %v1228 = vrot.slane %v1223, %v1227
      %v1229 = vlaneseq
      %v1230 = vshrl.u32 %v1229, 7
      %v1231 = vsub.s32 1, %v1230
      %v1232 = vrot.slane %v1223, %v1231
      %v1235 = vadd.f32 %v1219, %v1228
      %v1236 = vadd.f32 %v1220, %v1232
      %v1237 = vadd.f32 %v1221, %v1228
      %v1238 = vadd.f32 %v1222, %v1232
      %v1239 = vmax.f32 %v1235, 0.0
      %v1240 = vmax.f32 %v1236, 0.0
      %v1241 = vmax.f32 %v1237, 0.0
      %v1242 = vmax.f32 %v1238, 0.0
      %v1243 = vpack.c.bf16 %v1241, %v1239
      %v1244 = vpack.c.bf16 %v1242, %v1240
      %v1245 = vld [vmem:[%s3] sm:$0xf]
      %v1246 = vld [vmem:[%s3 + $0x4] sm:$0xf]
      %v1247 = vld [vmem:[%s3 + $0x8] sm:$0xf]
      %v1248 = vld [vmem:[%s3 + $0xc] sm:$0xf]
      %v1249 = vld [vmem:[%s3 + $0x10] sm:$0xf]
      %v1250 = vld [vmem:[%s3 + $0x14] sm:$0xf]
      %v1251 = vld [vmem:[%s3 + $0x18] sm:$0xf]
      %v1252 = vld [vmem:[%s3 + $0x1c] sm:$0xf]
      %v1253 = vld [vmem:[%s3 + $0x20] sm:$0xf]
      %v1254 = vld [vmem:[%s3 + $0x24] sm:$0xf]
      %v1255 = vld [vmem:[%s3 + $0x28] sm:$0xf]
      %v1256 = vld [vmem:[%s3 + $0x2c] sm:$0xf]
      %v1257 = vld [vmem:[%s3 + $0x30] sm:$0xf]
      %v1258 = vld [vmem:[%s3 + $0x34] sm:$0xf]
      %v1259 = vld [vmem:[%s3 + $0x38] sm:$0xf]
      %v1260 = vld [vmem:[%s3 + $0x3c] sm:$0xf]
      %v1261 = vld [vmem:[%s3 + $0x40] sm:$0xf]
      %v1262 = vld [vmem:[%s3 + $0x44] sm:$0xf]
      %v1263 = vld [vmem:[%s3 + $0x48] sm:$0xf]
      %v1264 = vld [vmem:[%s3 + $0x4c] sm:$0xf]
      %v1265 = vld [vmem:[%s3 + $0x50] sm:$0xf]
      %v1266 = vld [vmem:[%s3 + $0x54] sm:$0xf]
      %v1267 = vld [vmem:[%s3 + $0x58] sm:$0xf]
      %v1268 = vld [vmem:[%s3 + $0x5c] sm:$0xf]
      %v1269 = vld [vmem:[%s3 + $0x60] sm:$0xf]
      %v1270 = vld [vmem:[%s3 + $0x64] sm:$0xf]
      %v1271 = vld [vmem:[%s3 + $0x68] sm:$0xf]
      %v1272 = vld [vmem:[%s3 + $0x6c] sm:$0xf]
      %v1273 = vld [vmem:[%s3 + $0x70] sm:$0xf]
      %v1274 = vld [vmem:[%s3 + $0x74] sm:$0xf]
      %v1275 = vld [vmem:[%s3 + $0x78] sm:$0xf]
      %v1276 = vld [vmem:[%s3 + $0x7c] sm:$0xf]
      %v1277 = vld [vmem:[%s4] sm:$0x1]
      %v1279 = vlaneseq
      %v1280 = vshrl.u32 %v1279, 7
      %v1281 = vsub.s32 0, %v1280
      %v1282 = vrot.slane %v1277, %v1281
      %v1316 = vunpack.c.l.b16 %v1245
      %v1317 = vunpack.c.l.b16 %v1246
      %v1318 = vunpack.c.l.b16 %v1247
      %v1319 = vunpack.c.l.b16 %v1248
      %v1320 = vunpack.c.l.b16 %v1249
      %v1321 = vunpack.c.l.b16 %v1250
      %v1322 = vunpack.c.l.b16 %v1251
      %v1323 = vunpack.c.l.b16 %v1252
      %v1324 = vunpack.c.l.b16 %v1253
      %v1325 = vunpack.c.l.b16 %v1254
      %v1326 = vunpack.c.l.b16 %v1255
      %v1327 = vunpack.c.l.b16 %v1256
      %v1328 = vunpack.c.l.b16 %v1257
      %v1329 = vunpack.c.l.b16 %v1258
      %v1330 = vunpack.c.l.b16 %v1259
      %v1331 = vunpack.c.l.b16 %v1260
      %v1332 = vunpack.c.l.b16 %v1261
      %v1333 = vunpack.c.l.b16 %v1262
      %v1334 = vunpack.c.l.b16 %v1263
      %v1335 = vunpack.c.l.b16 %v1264
      %v1336 = vunpack.c.l.b16 %v1265
      %v1337 = vunpack.c.l.b16 %v1266
      %v1338 = vunpack.c.l.b16 %v1267
      %v1339 = vunpack.c.l.b16 %v1268
      %v1340 = vunpack.c.l.b16 %v1269
      %v1341 = vunpack.c.l.b16 %v1270
      %v1342 = vunpack.c.l.b16 %v1271
      %v1343 = vunpack.c.l.b16 %v1272
      %v1344 = vunpack.c.l.b16 %v1273
      %v1345 = vunpack.c.l.b16 %v1274
      %v1346 = vunpack.c.l.b16 %v1275
      %v1347 = vunpack.c.l.b16 %v1276
      %v1348 = vpack.c.b16 %v1317, %v1316
      %v1349 = vpack.c.b16 %v1319, %v1318
      %v1350 = vpack.c.b16 %v1321, %v1320
      %v1351 = vpack.c.b16 %v1323, %v1322
      %v1352 = vpack.c.b16 %v1325, %v1324
      %v1353 = vpack.c.b16 %v1327, %v1326
      %v1354 = vpack.c.b16 %v1329, %v1328
      %v1355 = vpack.c.b16 %v1331, %v1330
      %v1356 = vpack.c.b16 %v1333, %v1332
      %v1357 = vpack.c.b16 %v1335, %v1334
      %v1358 = vpack.c.b16 %v1337, %v1336
      %v1359 = vpack.c.b16 %v1339, %v1338
      %v1360 = vpack.c.b16 %v1341, %v1340
      %v1361 = vpack.c.b16 %v1343, %v1342
      %v1362 = vpack.c.b16 %v1345, %v1344
      %v1363 = vpack.c.b16 %v1347, %v1346
      %1380 = vmatprep.subr.bf16.mxu0 0
      %1381 = vmatpush1.bf16.msra.mxu0 %v1348
      %1382 = vmatprep.subr.bf16.mxu0 0
      %1383 = vmatpush1.bf16.msra.mxu0 %v1349
      %1384 = vmatprep.subr.bf16.mxu0 0
      %1385 = vmatpush1.bf16.msra.mxu0 %v1350
      %1386 = vmatprep.subr.bf16.mxu0 0
      %1387 = vmatpush1.bf16.msra.mxu0 %v1351
      %1388 = vmatprep.subr.bf16.mxu0 0
      %1389 = vmatpush1.bf16.msra.mxu0 %v1352
      %1390 = vmatprep.subr.bf16.mxu0 0
      %1391 = vmatpush1.bf16.msra.mxu0 %v1353
      %1392 = vmatprep.subr.bf16.mxu0 0
      %1393 = vmatpush1.bf16.msra.mxu0 %v1354
      %1394 = vmatprep.subr.bf16.mxu0 0
      %1395 = vmatpush1.bf16.msra.mxu0 %v1355
      %1396 = vmatprep.subr.bf16.mxu0 0
      %1397 = vmatpush1.bf16.msra.mxu0 %v1356
      %1398 = vmatprep.subr.bf16.mxu0 0
      %1399 = vmatpush1.bf16.msra.mxu0 %v1357
      %1400 = vmatprep.subr.bf16.mxu0 0
      %1401 = vmatpush1.bf16.msra.mxu0 %v1358
      %1402 = vmatprep.subr.bf16.mxu0 0
      %1403 = vmatpush1.bf16.msra.mxu0 %v1359
      %1404 = vmatprep.subr.bf16.mxu0 0
      %1405 = vmatpush1.bf16.msra.mxu0 %v1360
      %1406 = vmatprep.subr.bf16.mxu0 0
      %1407 = vmatpush1.bf16.msra.mxu0 %v1361
      %1408 = vmatprep.subr.bf16.mxu0 0
      %1409 = vmatpush1.bf16.msra.mxu0 %v1362
      %1410 = vmatprep.subr.bf16.mxu0 0
      %1411 = vmatpush1.bf16.msra.mxu0 %v1363
      %1412 = vmatprep.mubr.bf16.mxu0 %v1244
      %1413 = vmatmul.mubr.bf16.gmra.mrb[0].mxu0 %v1243
      %v1414 = vpop.f32.mrb[0].mxu0
      %v1415 = vadd.f32 %v1282, %v1414
      %v1416 = vpop.f32.mrb[0].mxu0
      %v1417 = vpop.f32.mrb[0].mxu0
      %v1418 = vadd.f32 %v1282, %v1417
      %v1419 = vpop.f32.mrb[0].mxu0
      %1420 = vdwg.mxu0
      %v1421 = vmax.f32 %v1415, 0.0
      %v1422 = vmax.f32 %v1418, 0.0
      %v1423 = vpack.c.bf16 %v1422, %v1421
      %v1424 = vld [vmem:[#allocation6] sm:$0xf]
      %v1425 = vld [vmem:[#allocation6 + $0x4] sm:$0xf]
      %v1426 = vld [vmem:[#allocation6 + $0x8] sm:$0xf]
      %v1427 = vld [vmem:[#allocation6 + $0xc] sm:$0xf]
      %v1428 = vld [vmem:[#allocation6 + $0x10] sm:$0xf]
      %v1429 = vld [vmem:[#allocation6 + $0x14] sm:$0xf]
      %v1430 = vld [vmem:[#allocation6 + $0x18] sm:$0xf]
      %v1431 = vld [vmem:[#allocation6 + $0x1c] sm:$0xf]
      %v1432 = vld [vmem:[#allocation6 + $0x20] sm:$0xf]
      %v1433 = vld [vmem:[#allocation6 + $0x24] sm:$0xf]
      %v1434 = vld [vmem:[#allocation6 + $0x28] sm:$0xf]
      %v1435 = vld [vmem:[#allocation6 + $0x2c] sm:$0xf]
      %v1436 = vld [vmem:[#allocation6 + $0x30] sm:$0xf]
      %v1437 = vld [vmem:[#allocation6 + $0x34] sm:$0xf]
      %v1438 = vld [vmem:[#allocation6 + $0x38] sm:$0xf]
      %v1439 = vld [vmem:[#allocation6 + $0x3c] sm:$0xf]
      %v1440 = vld [vmem:[%s6] sm:$0x1]
      %v1442 = vlaneseq
      %v1443 = vshrl.u32 %v1442, 7
      %v1444 = vsub.s32 0, %v1443
      %v1445 = vrot.slane %v1440, %v1444
      %v1463 = vunpack.c.l.b16 %v1424
      %v1464 = vunpack.c.l.b16 %v1425
      %v1465 = vunpack.c.l.b16 %v1426
      %v1466 = vunpack.c.l.b16 %v1427
      %v1467 = vunpack.c.l.b16 %v1428
      %v1468 = vunpack.c.l.b16 %v1429
      %v1469 = vunpack.c.l.b16 %v1430
      %v1470 = vunpack.c.l.b16 %v1431
      %v1471 = vunpack.c.l.b16 %v1432
      %v1472 = vunpack.c.l.b16 %v1433
      %v1473 = vunpack.c.l.b16 %v1434
      %v1474 = vunpack.c.l.b16 %v1435
      %v1475 = vunpack.c.l.b16 %v1436
      %v1476 = vunpack.c.l.b16 %v1437
      %v1477 = vunpack.c.l.b16 %v1438
      %v1478 = vunpack.c.l.b16 %v1439
      %v1479 = vpack.c.b16 %v1464, %v1463
      %v1480 = vpack.c.b16 %v1466, %v1465
      %v1481 = vpack.c.b16 %v1468, %v1467
      %v1482 = vpack.c.b16 %v1470, %v1469
      %v1483 = vpack.c.b16 %v1472, %v1471
      %v1484 = vpack.c.b16 %v1474, %v1473
      %v1485 = vpack.c.b16 %v1476, %v1475
      %v1486 = vpack.c.b16 %v1478, %v1477
      %1495 = vmatprep.subr.bf16.mxu0 0
      %1496 = vmatpush1.bf16.msra.mxu0 %v1479
      %1497 = vmatprep.subr.bf16.mxu0 0
      %1498 = vmatpush1.bf16.msra.mxu0 %v1480
      %1499 = vmatprep.subr.bf16.mxu0 0
      %1500 = vmatpush1.bf16.msra.mxu0 %v1481
      %1501 = vmatprep.subr.bf16.mxu0 0
      %1502 = vmatpush1.bf16.msra.mxu0 %v1482
      %1503 = vmatprep.subr.bf16.mxu0 0
      %1504 = vmatpush1.bf16.msra.mxu0 %v1483
      %1505 = vmatprep.subr.bf16.mxu0 0
      %1506 = vmatpush1.bf16.msra.mxu0 %v1484
      %1507 = vmatprep.subr.bf16.mxu0 0
      %1508 = vmatpush1.bf16.msra.mxu0 %v1485
      %1509 = vmatprep.subr.bf16.mxu0 0
      %1510 = vmatpush1.bf16.msra.mxu0 %v1486
      %1511 = vmatprep.subr.bf16.mxu0 0
      %1512 = vmatpush1.bf16.msra.mxu0 0
      %1513 = vmatprep.subr.bf16.mxu0 0
      %1514 = vmatpush1.bf16.msra.mxu0 0
      %1515 = vmatprep.subr.bf16.mxu0 0
      %1516 = vmatpush1.bf16.msra.mxu0 0
      %1517 = vmatprep.subr.bf16.mxu0 0
      %1518 = vmatpush1.bf16.msra.mxu0 0
      %1519 = vmatprep.subr.bf16.mxu0 0
      %1520 = vmatpush1.bf16.msra.mxu0 0
      %1521 = vmatprep.subr.bf16.mxu0 0
      %1522 = vmatpush1.bf16.msra.mxu0 0
      %1523 = vmatprep.subr.bf16.mxu0 0
      %1524 = vmatpush1.bf16.msra.mxu0 0
      %1525 = vmatprep.subr.bf16.mxu0 0
      %1526 = vmatpush1.bf16.msra.mxu0 0
      %1527 = vmatprep.mubr.bf16.mxu0 0
      %1528 = vmatmul.mubr.bf16.gmra.mrb[0].mxu0 %v1423
      %v1529 = vpop.f32.mrb[0].mxu0
      %v1530 = vadd.f32 %v1445, %v1529
      %v1531 = vpop.f32.mrb[0].mxu0
      %v1532 = vpop.f32.mrb[0].mxu0
      %v1533 = vadd.f32 %v1445, %v1532
      %v1534 = vpop.f32.mrb[0].mxu0
      %1535 = vdwg.mxu0
      %v1536 = vlaneseq
      %v1537 = vand.u32 %v1536, 127
      %vm1538 = vcmp.eq.s32.totalorder %v1537, 0
      %v1539 = vmul.f32 %v1530, 0.5
      %v1540 = vmul.f32 %v1533, 0.5
      %v1541 = vsel %vm1538, %v1539, %v1530
      %v1542 = vsel %vm1538, %v1540, %v1533
      %v1543 = vtanh.pop %v1541
      %v1544 = vtanh.pop %v1542
      %v1545 = vmul.f32 %v1543, 0.5
      %v1546 = vmul.f32 %v1544, 0.5
      %v1547 = vadd.f32 %v1545, 0.5
      %v1548 = vadd.f32 %v1546, 0.5
      %v1549 = vsel %vm1538, %v1547, %v1543
      %v1550 = vsel %vm1538, %v1548, %v1544
      %vm1551 = vcmask 15360
      %1552 = vst.msk [vmem:[#allocation8] sm:$0xff] %vm1551, %v1549
      %1553 = vst.msk [vmem:[#allocation8 + $0x8] sm:$0xff] %vm1551, %v1550
    $region45: #{actor_forward.1} parent=1 // pred_fallthru
      _
    // Predicated region
    $region46: #{actor_forward.1} parent=1 // pred_check
      _
    $region47: #{actor_forward.1} parent=1 // pred_check_branch
      %1555 = sbr.rel (0) target = $region49
    $region48: #{actor_forward.1} parent=1 // pred_region
      %s1557 = ssub.s32 256, 32
      %1558 = vsyncadd [#allocation5], %s1557
      %s1559 = sshll.u32 [#allocation8], 4
      %s1560 = int_to_ptr.vmem [resolvable:$true] %s1559
      %1565 = dma.vmem_to_hbm [thread:$0]  %s1560, 32, %s7, [#allocation5], 32, 32, 2
    $region49: #{actor_forward.1} parent=1 // pred_fallthru
      _
    // Predicated region
    $region50: #{actor_forward.1} parent=1 // pred_check
      _
    $region51: #{actor_forward.1} parent=1 // pred_check_branch
      %1567 = sbr.rel (0) target = $region53
    $region52: #{actor_forward.1} parent=1 // pred_region
      %1568 = dma.done [#allocation5], 256
    $region53: #{actor_forward.1} parent=1 // pred_fallthru
      _
    %1569 = vsyncpa [#allocation4], 1
    %1570 = vsyncpa [#allocation7], 1
    %1571 = vsyncpa [#allocation5], 1

</llo_original>
